<compile_context>
chip_gen: v5e
topology: v5e:2x2
jax: 0.10.0
libtpu: 0.0.40
codegen_flags: <defaults>
</compile_context>

<pallas_src>
import functools

import jax
import jax.numpy as jnp
from jax import lax
from jax.experimental import pallas as pl
from jax.experimental.pallas import tpu as pltpu


_SQRT_HALF = 0.7071067811865476


def _gelu(y):
    # Exact (erf) GELU, matching torch.nn.GELU default.
    return 0.5 * y * (1.0 + lax.erf(y * _SQRT_HALF))


def _round_up(x, m):
    return ((x + m - 1) // m) * m


# ----------------------------- Pallas kernels --------------------------------


def _conv_norm_gelu_kernel(x_ref, w_ref, p_ref, o_ref, *, norm, eps, use_bias,
                           inv_c):
    """Single-pass conv (+ bias) (+ LayerNorm over channels) + GELU.

    x_ref : (1, CKp, tT)   im2col patches tile (channel-major, time on lanes)
    w_ref : (Cp, CKp)      conv weight
    p_ref : (Cp, 8)        packed params: col0=bias, col1=gamma, col2=beta
    o_ref : (1, Cp, tT)
    """
    x = x_ref[0]                      # (CKp, tT)
    w = w_ref[...]                    # (Cp, CKp)
    p = p_ref[...]                    # (Cp, 8)

    y = jnp.dot(w, x, preferred_element_type=jnp.float32)   # (Cp, tT)

    if use_bias:
        y = y + p[:, 0:1]

    if norm == "layer":
        # LayerNorm over the channel dim at each time step (padded channel
        # rows are exactly zero, so dividing by the true channel count is
        # exact).  Fused E[y^2] - mean^2 variance.
        s = jnp.sum(y, axis=0, keepdims=True) * inv_c         # (1, tT)
        sq = jnp.sum(y * y, axis=0, keepdims=True) * inv_c
        var = jnp.maximum(sq - s * s, 0.0)
        y = (y - s) * lax.rsqrt(var + eps)
        y = y * p[:, 1:2] + p[:, 2:3]

    o_ref[0] = _gelu(y).astype(o_ref.dtype)


def _conv_stats_kernel(x_ref, w_ref, y_ref, stats_ref):
    """GroupNorm pass A: conv tile + per-channel sum / sum-of-squares.

    The stats block (1, Cp, 8) keeps the same block index across the T axis
    ("arbitrary"), so it acts as a resident accumulator (lane 0 = sum,
    lane 1 = sum of squares).  Bias is intentionally NOT added: the per-channel
    mean subtraction of GroupNorm cancels it exactly.
    """
    x = x_ref[0]                      # (CKp, tT)
    w = w_ref[...]                    # (Cp, CKp)
    y = jnp.dot(w, x, preferred_element_type=jnp.float32)    # (Cp, tT)
    y_ref[0] = y

    @pl.when(pl.program_id(1) == 0)
    def _():
        stats_ref[...] = jnp.zeros_like(stats_ref)

    s = jnp.sum(y, axis=1, keepdims=True)                     # (Cp, 1)
    sq = jnp.sum(y * y, axis=1, keepdims=True)                # (Cp, 1)
    lane = lax.broadcasted_iota(jnp.int32, stats_ref.shape[1:], 1)  # (Cp, 8)
    upd = jnp.where(lane == 0, s, 0.0) + jnp.where(lane == 1, sq, 0.0)
    stats_ref[0] = stats_ref[0] + upd


def _groupnorm_gelu_kernel(y_ref, stats_ref, p_ref, o_ref, *, eps, inv_t):
    """GroupNorm pass B: normalize + affine + GELU per tile."""
    y = y_ref[0]                      # (Cp, tT) f32
    st = stats_ref[0]                 # (Cp, 8)
    p = p_ref[...]                    # (Cp, 8)

    mean = st[:, 0:1] * inv_t         # (Cp, 1)  (inv_t uses the TRUE T_out)
    msq = st[:, 1:2] * inv_t
    var = jnp.maximum(msq - mean * mean, 0.0)

    y = (y - mean) * lax.rsqrt(var + eps)
    y = y * p[:, 1:2] + p[:, 2:3]
    o_ref[0] = _gelu(y).astype(o_ref.dtype)


# ------------------------------ JAX wrapper ----------------------------------


def _im2col_cmajor(x, kernel_size, stride):
    """x: (N, C_in, T_in) -> (N, C_in*K, T_out); row index is c*K + k."""
    n, c, t = x.shape
    t_out = (t - kernel_size) // stride + 1
    idx = (jnp.arange(t_out)[None, :] * stride
           + jnp.arange(kernel_size)[:, None])                # (K, T_out)
    patches = x[:, :, idx]                                    # (N, C, K, T_out)
    return patches.reshape(n, c * kernel_size, t_out), t_out


def _choose_tile_t(t_out, tile_t):
    """Pick a T tile (multiple of 8, multiple of 128 when tiling) and T_pad."""
    t_pad8 = _round_up(t_out, 8)
    if t_pad8 <= max(tile_t, 8):
        return t_pad8, t_pad8                     # single tile == full dim
    tt = max(128, (tile_t // 128) * 128)
    return tt, _round_up(t_out, tt)


def wav2vec2_feature_extraction_layer(seqs, weight, bias, norm_weight,
                                      norm_bias, *, kernel_size, stride,
                                      norm=None, eps=1e-5, tile_t=512,
                                      matmul_dtype=None,
                                      vmem_limit_bytes=None):
    """Forward pass matching Wav2Vec2FeatureExtractionLayer (eval mode).

    seqs        : (N, C_in, T_in) float32
    weight      : (C_out, C_in, K) Conv1d weight
    bias        : (C_out,) or None
    norm_weight : (C_out,) or None
    norm_bias   : (C_out,) or None
    norm        : None | "group" | "layer"
    tile_t      : T tile (rows of output time per grid step).  512 is safe on
                  all generations; up to ~2048 on v5e/v6e with a raised
                  vmem_limit_bytes.
    matmul_dtype: e.g. jnp.bfloat16 to halve the MXU/HBM stream on v6e/v7x
                  (post-matmul math stays f32).
    returns     : (N, C_out, T_out)
    """
    n, c_in, _ = seqs.shape
    c_out = weight.shape[0]
    ck = c_in * kernel_size

    patches, t_out = _im2col_cmajor(seqs, kernel_size, stride)   # (N, CK, T)

    ck_p = _round_up(ck, 128)
    c_out_p = _round_up(c_out, 128)
    tt, t_pad = _choose_tile_t(t_out, tile_t)
    n_t = t_pad // tt

    patches = jnp.pad(patches, ((0, 0), (0, ck_p - ck), (0, t_pad - t_out)))
    w_mat = jnp.pad(weight.reshape(c_out, ck),
                    ((0, c_out_p - c_out), (0, ck_p - ck)))       # (Cp, CKp)

    use_bias = bias is not None
    b = bias if use_bias else jnp.zeros((c_out,), jnp.float32)
    g = norm_weight if norm_weight is not None else jnp.ones((c_out,),
                                                             jnp.float32)
    bt = norm_bias if norm_bias is not None else jnp.zeros((c_out,),
                                                           jnp.float32)
    zeros = jnp.zeros((c_out,), jnp.float32)
    params = jnp.stack([b, g, bt, zeros, zeros, zeros, zeros, zeros], axis=1)
    params = jnp.pad(params.astype(jnp.float32),
                     ((0, c_out_p - c_out), (0, 0)))              # (Cp, 8)

    if matmul_dtype is not None:
        patches = patches.astype(matmul_dtype)
        w_mat = w_mat.astype(matmul_dtype)

    out_dtype = seqs.dtype
    parallel_params = pltpu.CompilerParams(
        dimension_semantics=("parallel", "parallel"),
        vmem_limit_bytes=vmem_limit_bytes)

    if norm == "group":
        # ---- pass A: conv + per-channel sum / sum-of-squares over T ----
        y_conv, stats = pl.pallas_call(
            _conv_stats_kernel,
            out_shape=(jax.ShapeDtypeStruct((n, c_out_p, t_pad), jnp.float32),
                       jax.ShapeDtypeStruct((n, c_out_p, 8), jnp.float32)),
            grid_spec=pltpu.PrefetchScalarGridSpec(
                num_scalar_prefetch=0,
                grid=(n, n_t),
                in_specs=[
                    pl.BlockSpec((1, ck_p, tt), lambda b_, t_: (b_, 0, t_)),
                    pl.BlockSpec((c_out_p, ck_p), lambda b_, t_: (0, 0)),
                ],
                out_specs=[
                    pl.BlockSpec((1, c_out_p, tt), lambda b_, t_: (b_, 0, t_)),
                    pl.BlockSpec((1, c_out_p, 8), lambda b_, t_: (b_, 0, 0)),
                ],
            ),
            compiler_params=pltpu.CompilerParams(
                dimension_semantics=("parallel", "arbitrary"),
                vmem_limit_bytes=vmem_limit_bytes),
        )(patches, w_mat)

        # ---- pass B: normalize + affine + GELU ----
        kernel_b = functools.partial(_groupnorm_gelu_kernel, eps=eps,
                                     inv_t=1.0 / t_out)
        out = pl.pallas_call(
            kernel_b,
            out_shape=jax.ShapeDtypeStruct((n, c_out_p, t_pad), out_dtype),
            grid_spec=pltpu.PrefetchScalarGridSpec(
                num_scalar_prefetch=0,
                grid=(n, n_t),
                in_specs=[
                    pl.BlockSpec((1, c_out_p, tt), lambda b_, t_: (b_, 0, t_)),
                    pl.BlockSpec((1, c_out_p, 8), lambda b_, t_: (b_, 0, 0)),
                    pl.BlockSpec((c_out_p, 8), lambda b_, t_: (0, 0)),
                ],
                out_specs=pl.BlockSpec((1, c_out_p, tt),
                                       lambda b_, t_: (b_, 0, t_)),
            ),
            compiler_params=parallel_params,
        )(y_conv, stats, params)
    else:
        kernel = functools.partial(_conv_norm_gelu_kernel, norm=norm, eps=eps,
                                   use_bias=use_bias, inv_c=1.0 / c_out)
        out = pl.pallas_call(
            kernel,
            out_shape=jax.ShapeDtypeStruct((n, c_out_p, t_pad), out_dtype),
            grid_spec=pltpu.PrefetchScalarGridSpec(
                num_scalar_prefetch=0,
                grid=(n, n_t),
                in_specs=[
                    pl.BlockSpec((1, ck_p, tt), lambda b_, t_: (b_, 0, t_)),
                    pl.BlockSpec((c_out_p, ck_p), lambda b_, t_: (0, 0)),
                    pl.BlockSpec((c_out_p, 8), lambda b_, t_: (0, 0)),
                ],
                out_specs=pl.BlockSpec((1, c_out_p, tt),
                                       lambda b_, t_: (b_, 0, t_)),
            ),
            compiler_params=parallel_params,
        )(patches, w_mat, params)

    # Already in PyTorch Conv1d layout; just drop channel / time padding.
    return out[:, :c_out, :t_out]


# ------------------------------ pure-JAX reference ---------------------------


def _reference(seqs, weight, bias, norm_weight, norm_bias, *, kernel_size,
               stride, norm, eps=1e-5):
    y = lax.conv_general_dilated(
        seqs, weight, window_strides=(stride,), padding="VALID",
        dimension_numbers=("NCH", "OIH", "NCH"))
    if bias is not None:
        y = y + bias[None, :, None]
    if norm == "group":
        mean = jnp.mean(y, axis=2, keepdims=True)
        var = jnp.mean((y - mean) ** 2, axis=2, keepdims=True)
        y = (y - mean) / jnp.sqrt(var + eps)
        y = y * norm_weight[None, :, None] + norm_bias[None, :, None]
    elif norm == "layer":
        mean = jnp.mean(y, axis=1, keepdims=True)
        var = jnp.mean((y - mean) ** 2, axis=1, keepdims=True)
        y = (y - mean) / jnp.sqrt(var + eps)
        y = y * norm_weight[None, :, None] + norm_bias[None, :, None]
    return 0.5 * y * (1.0 + lax.erf(y / jnp.sqrt(2.0)))


# ----------------------------------- main ------------------------------------


if __name__ == "__main__":
    # Small shapes consistent with a wav2vec2 feature-extraction layer.
    N, C_IN, T_IN = 2, 4, 80
    C_OUT, K, STRIDE = 32, 10, 5
    T_OUT = (T_IN - K) // STRIDE + 1

    key = jax.random.PRNGKey(0)
    k_x, k_w, k_b, k_g, k_beta = jax.random.split(key, 5)

    seqs = jax.random.normal(k_x, (N, C_IN, T_IN), jnp.float32)

    # Deterministic kaiming_normal_-style init: std = sqrt(2 / fan_in).
    fan_in = C_IN * K
    weight = jax.random.normal(k_w, (C_OUT, C_IN, K), jnp.float32) * jnp.sqrt(
        2.0 / fan_in)
    bias = jax.random.normal(k_b, (C_OUT,), jnp.float32) * 0.1
    norm_w = 1.0 + 0.1 * jax.random.normal(k_g, (C_OUT,), jnp.float32)
    norm_b = 0.1 * jax.random.normal(k_beta, (C_OUT,), jnp.float32)

    ok = True
    # wav2vec2 first layer style: GroupNorm(C_OUT, C_OUT) after the conv.
    for norm_mode in ("group", "layer"):
        out = wav2vec2_feature_extraction_layer(
            seqs, weight, bias, norm_w, norm_b,
            kernel_size=K, stride=STRIDE, norm=norm_mode)
        out = jax.block_until_ready(out)
        ref = _reference(seqs, weight, bias, norm_w, norm_b,
                         kernel_size=K, stride=STRIDE, norm=norm_mode)
        assert out.shape == (N, C_OUT, T_OUT), out.shape
        err = float(jnp.max(jnp.abs(out - ref)))
        assert jnp.allclose(out, ref, atol=1e-4, rtol=1e-4), (norm_mode, err)
        ok = ok and True

    if ok:
        print("KERNEL_OK")
</pallas_src>

<mosaic_0001>
module attributes {stable_mosaic.version = 11 : i64} {
  func.func @_conv_stats_kernel(%arg0: i32, %arg1: i32, %arg2: memref<1x128x16xf32, #tpu.memory_space<vmem>>, %arg3: memref<128x128xf32, #tpu.memory_space<vmem>>, %arg4: memref<1x128x16xf32, #tpu.memory_space<vmem>>, %arg5: memref<1x128x8xf32, #tpu.memory_space<vmem>>) attributes {dimension_semantics = [#tpu.dimension_semantics<parallel>, #tpu.dimension_semantics<arbitrary>], iteration_bounds = array<i64: 2, 1>, scalar_prefetch = 0 : i64, scratch_operands = 0 : i64, tpu.core_type = #tpu.core_type<tc>, window_params = [{transform_indices = @transform_0, window_bounds = array<i64: 1, 128, 16>}, {pipeline_mode = #tpu.pipeline_mode<synchronous>, transform_indices = @transform_1, window_bounds = array<i64: 128, 128>}, {transform_indices = @transform_2, window_bounds = array<i64: 1, 128, 16>}, {transform_indices = @transform_3, window_bounds = array<i64: 1, 128, 8>}]} {
    %c0 = arith.constant 0 : index
    %c0_0 = arith.constant 0 : index
    %c0_1 = arith.constant 0 : index
    %0 = vector.load %arg2[%c0, %c0_0, %c0_1] : memref<1x128x16xf32, #tpu.memory_space<vmem>>, vector<1x128x16xf32>
    %1 = vector.shape_cast %0 : vector<1x128x16xf32> to vector<128x16xf32>
    %c0_2 = arith.constant 0 : index
    %c0_3 = arith.constant 0 : index
    %2 = vector.load %arg3[%c0_2, %c0_3] : memref<128x128xf32, #tpu.memory_space<vmem>>, vector<128x128xf32>
    %cst = arith.constant dense<0.000000e+00> : vector<128x16xf32>
    %3 = tpu.matmul %2, %1, %cst {dimension_numbers = #tpu.dot_dimension_numbers<[1], [0], [0], [1], [0, 0, 1, 1], [], []>} : vector<128x128xf32>, vector<128x16xf32>, vector<128x16xf32> -> vector<128x16xf32>
    %c0_4 = arith.constant 0 : index
    %c0_5 = arith.constant 0 : index
    %c0_6 = arith.constant 0 : index
    %4 = vector.load %arg4[%c0_4, %c0_5, %c0_6] : memref<1x128x16xf32, #tpu.memory_space<vmem>>, vector<1x128x16xf32>
    %5 = vector.shape_cast %4 : vector<1x128x16xf32> to vector<128x16xf32>
    %6 = vector.shape_cast %3 : vector<128x16xf32> to vector<1x128x16xf32>
    tpu.vector_store %arg4[%c0_4, %c0_5, %c0_6], %6 {strides = array<i32>} : memref<1x128x16xf32, #tpu.memory_space<vmem>>, vector<1x128x16xf32>,
    %c0_i32 = arith.constant 0 : i32
    %7 = arith.cmpi eq, %arg1, %c0_i32 : i32
    %8 = arith.extui %7 : i1 to i32
    %c0_i32_7 = arith.constant 0 : i32
    %9 = arith.cmpi ne, %8, %c0_i32_7 : i32
    scf.if %9 {
      %cst_19 = arith.constant 0.000000e+00 : f32
      %35 = vector.broadcast %cst_19 : f32 to vector<1x128x8xf32>
      %c0_20 = arith.constant 0 : index
      %c0_21 = arith.constant 0 : index
      %c0_22 = arith.constant 0 : index
      %36 = vector.load %arg5[%c0_20, %c0_21, %c0_22] : memref<1x128x8xf32, #tpu.memory_space<vmem>>, vector<1x128x8xf32>
      tpu.vector_store %arg5[%c0_20, %c0_21, %c0_22], %35 {strides = array<i32>} : memref<1x128x8xf32, #tpu.memory_space<vmem>>, vector<1x128x8xf32>,
    } else {
    }
    %cst_8 = arith.constant dense<0.000000e+00> : vector<128xf32>
    %10 = vector.multi_reduction <add>, %3, %cst_8 [1] : vector<128x16xf32> to vector<128xf32>
    %11 = vector.shape_cast %10 : vector<128xf32> to vector<128x1xf32>
    %12 = arith.mulf %3, %3 : vector<128x16xf32>
    %cst_9 = arith.constant dense<0.000000e+00> : vector<128xf32>
    %13 = vector.multi_reduction <add>, %12, %cst_9 [1] : vector<128x16xf32> to vector<128xf32>
    %14 = vector.shape_cast %13 : vector<128xf32> to vector<128x1xf32>
    %15 = tpu.iota {dimensions = array<i32: 1>} : vector<128x8xi32>
    %c0_i32_10 = arith.constant 0 : i32
    %16 = vector.broadcast %c0_i32_10 : i32 to vector<128x8xi32>
    %17 = arith.cmpi eq, %15, %16 : vector<128x8xi32>
    %cst_11 = arith.constant 0.000000e+00 : f32
    %18 = vector.shape_cast %11 : vector<128x1xf32> to vector<128x1xf32>
    %19 = vector.broadcast %18 : vector<128x1xf32> to vector<128x8xf32>
    %20 = vector.broadcast %cst_11 : f32 to vector<128x8xf32>
    %21 = arith.select %17, %19, %20 : vector<128x8xi1>, vector<128x8xf32>
    %c1_i32 = arith.constant 1 : i32
    %22 = vector.broadcast %c1_i32 : i32 to vector<128x8xi32>
    %23 = arith.cmpi eq, %15, %22 : vector<128x8xi32>
    %cst_12 = arith.constant 0.000000e+00 : f32
    %24 = vector.shape_cast %14 : vector<128x1xf32> to vector<128x1xf32>
    %25 = vector.broadcast %24 : vector<128x1xf32> to vector<128x8xf32>
    %26 = vector.broadcast %cst_12 : f32 to vector<128x8xf32>
    %27 = arith.select %23, %25, %26 : vector<128x8xi1>, vector<128x8xf32>
    %28 = arith.addf %21, %27 : vector<128x8xf32>
    %c0_13 = arith.constant 0 : index
    %c0_14 = arith.constant 0 : index
    %c0_15 = arith.constant 0 : index
    %29 = vector.load %arg5[%c0_13, %c0_14, %c0_15] : memref<1x128x8xf32, #tpu.memory_space<vmem>>, vector<1x128x8xf32>
    %30 = vector.shape_cast %29 : vector<1x128x8xf32> to vector<128x8xf32>
    %31 = arith.addf %30, %28 : vector<128x8xf32>
    %c0_16 = arith.constant 0 : index
    %c0_17 = arith.constant 0 : index
    %c0_18 = arith.constant 0 : index
    %32 = vector.load %arg5[%c0_16, %c0_17, %c0_18] : memref<1x128x8xf32, #tpu.memory_space<vmem>>, vector<1x128x8xf32>
    %33 = vector.shape_cast %32 : vector<1x128x8xf32> to vector<128x8xf32>
    %34 = vector.shape_cast %31 : vector<128x8xf32> to vector<1x128x8xf32>
    tpu.vector_store %arg5[%c0_16, %c0_17, %c0_18], %34 {strides = array<i32>} : memref<1x128x8xf32, #tpu.memory_space<vmem>>, vector<1x128x8xf32>,
    return
  }
  func.func @transform_0(%arg0: i32, %arg1: i32) -> (i32, i32, i32) {
    %c0_i32 = arith.constant 0 : i32
    %c0_i32_0 = arith.constant 0 : i32
    return %arg0, %c0_i32, %arg1 : i32, i32, i32
  }
  func.func @transform_1(%arg0: i32, %arg1: i32) -> (i32, i32) {
    %c0_i32 = arith.constant 0 : i32
    %c0_i32_0 = arith.constant 0 : i32
    %c0_i32_1 = arith.constant 0 : i32
    return %c0_i32, %c0_i32_0 : i32, i32
  }
  func.func @transform_2(%arg0: i32, %arg1: i32) -> (i32, i32, i32) {
    %c0_i32 = arith.constant 0 : i32
    %c0_i32_0 = arith.constant 0 : i32
    return %arg0, %c0_i32, %arg1 : i32, i32, i32
  }
  func.func @transform_3(%arg0: i32, %arg1: i32) -> (i32, i32, i32) {
    %c0_i32 = arith.constant 0 : i32
    %c0_i32_0 = arith.constant 0 : i32
    %c0_i32_1 = arith.constant 0 : i32
    return %arg0, %c0_i32, %c0_i32_0 : i32, i32, i32
  }
}

</mosaic_0001>

<llo_original>
// kernel: tpu_custom_call.1
$region0: #{tpu_custom_call.1}
  #allocation0 [shape = 'u32[]', space=smem, size = 0x4, offset = 0x4, fixed_abs, tag = 'smem constant byte address 0x4 - core index']
  #allocation1 [shape = 'u32[72,128]{1,0:T(1,128)}', space=vmem, size = 0x9000, scoped, tag = 'internal scratch']
  %s0 = inlined_call_operand.vmem [shape: f32[2,128,16], index: 0, kind: input, shape index: {}]
  %s1 = inlined_call_operand.vmem [shape: f32[128,128], index: 1, kind: input, shape index: {}]
  %s2 = inlined_call_operand.vmem [shape: f32[2,128,16], index: 2, kind: output, shape index: {0}]
  %s3 = inlined_call_operand.vmem [shape: f32[2,128,8], index: 3, kind: output, shape index: {1}]
  %4 = xla_tuple %s2, %s3
  %s5 = sld [smem:[#allocation0]]
  $region53: #{tpu_custom_call.1} parent=0
    _
  %s7 = ssub.s32 1, %s5
  %s8 = scalar_select 0, %s7, %s5
  loop: start=0, step=1, limit=4
  $region2: #{tpu_custom_call.1} parent=0 // loop_pre_header
    _
  $region3: #{tpu_custom_call.1} parent=0 // loop_header
    %s10 = sphi 0, %s14
    %p11 = scmp.ge.s32.totalorder %s10, 4
    %s17 = sphi 0, %s29
    %s18 = sphi 0, %s25
    %s19 = sphi 0, %s17
    %s20 = sphi 0, %s18
    %s21 = sphi 0, %s19
    %s22 = sphi 0, %s20
    %s34 = sphi 0, %s36
    %s37 = sphi 0, %s34
    %s38 = sphi 0, %s37
    %s54 = sphi 0, %s38
    %s58 = sphi 0, %s58
    %s60 = sphi 0, %s58
    %s61 = sphi 0, %s60
    %s75 = sphi 0, %s61
    %s83 = sphi 0, %s85
    %s86 = sphi 0, %s83
    %s87 = sphi 0, %s86
    %s103 = sphi 0, %s87
    %s109 = sphi 0, %s111
    %s112 = sphi 0, %s109
    %s113 = sphi 0, %s112
    %s129 = sphi 0, %s113
  $region4: #{tpu_custom_call.1} parent=0 // loop_header_branch
    %13 = sbr.rel (%p11) target = $region8
  $region5: #{tpu_custom_call.1} parent=0 // loop_body
    %s15 = ssub.s32 %s10, 1
    %s16 = ssub.s32 %s10, 2
    %s23 = sadd.s32 1, %s18
    %p24 = scmp.ge.s32.totalorder %s23, 1
    %s25 = scalar_select %p24, 0, %s23
    %s26 = sadd.s32 1, %s17
    %s27 = scalar_select %p24, %s26, %s17
    %p28 = scmp.ge.s32.totalorder %s27, 2
    %s29 = scalar_select %p28, 0, %s27
    %s30 = ssub.s32 %s17, %s29
    %s31 = ssub.s32 %s18, %s25
    %s32 = sor.u32 %s30, %s31
    %p33 = scmp.eq.s32.totalorder %s32, 0
    %s35 = sadd.s32 %s34, 1
    %s36 = scalar_select %p33, %s34, %s35
    %p39 = pneg %p33
    %p40 = scmp.eq.s32.totalorder %s10, 1
    %p41 = por %p39, %p40
    %p42 = scmp.ne.s32.totalorder %s34, %s37
    %p43 = scmp.eq.s32.totalorder %s10, 0
    %p44 = por %p42, %p43
    %p45 = scmp.ne.s32.totalorder %s34, %s37
    %p46 = scmp.eq.s32.totalorder %s15, 1
    %p47 = por %p45, %p46
    %p48 = scmp.ne.s32.totalorder %s37, %s38
    %p49 = scmp.eq.s32.totalorder %s15, 0
    %p50 = por %p48, %p49
    %p51 = scmp.ne.s32.totalorder %s37, %s38
    %p52 = scmp.eq.s32.totalorder %s16, 1
    %p53 = por %p51, %p52
    %p55 = scmp.ne.s32.totalorder %s38, %s54
    %p56 = scmp.eq.s32.totalorder %s16, 0
    %p57 = por %p55, %p56
    %s59 = sadd.s32 %s58, 1
    %p62 = scmp.eq.s32.totalorder %s10, 1
    %p63 = scmp.ne.s32.totalorder %s58, %s60
    %p64 = scmp.eq.s32.totalorder %s10, 0
    %p65 = por %p63, %p64
    %p66 = scmp.ne.s32.totalorder %s58, %s60
    %p67 = scmp.eq.s32.totalorder %s15, 1
    %p68 = por %p66, %p67
    %p69 = scmp.ne.s32.totalorder %s60, %s61
    %p70 = scmp.eq.s32.totalorder %s15, 0
    %p71 = por %p69, %p70
    %p72 = scmp.ne.s32.totalorder %s60, %s61
    %p73 = scmp.eq.s32.totalorder %s16, 1
    %p74 = por %p72, %p73
    %p76 = scmp.ne.s32.totalorder %s61, %s75
    %p77 = scmp.eq.s32.totalorder %s16, 0
    %p78 = por %p76, %p77
    %s79 = ssub.s32 %s17, %s29
    %s80 = ssub.s32 %s18, %s25
    %s81 = sor.u32 %s79, %s80
    %p82 = scmp.eq.s32.totalorder %s81, 0
    %s84 = sadd.s32 %s83, 1
    %s85 = scalar_select %p82, %s83, %s84
    %p88 = pneg %p82
    %p89 = scmp.eq.s32.totalorder %s10, 1
    %p90 = por %p88, %p89
    %p91 = scmp.ne.s32.totalorder %s83, %s86
    %p92 = scmp.eq.s32.totalorder %s10, 0
    %p93 = por %p91, %p92
    %p94 = scmp.ne.s32.totalorder %s83, %s86
    %p95 = scmp.eq.s32.totalorder %s15, 1
    %p96 = por %p94, %p95
    %p97 = scmp.ne.s32.totalorder %s86, %s87
    %p98 = scmp.eq.s32.totalorder %s15, 0
    %p99 = por %p97, %p98
    %p100 = scmp.ne.s32.totalorder %s86, %s87
    %p101 = scmp.eq.s32.totalorder %s16, 1
    %p102 = por %p100, %p101
    %p104 = scmp.ne.s32.totalorder %s87, %s103
    %p105 = scmp.eq.s32.totalorder %s16, 0
    %p106 = por %p104, %p105
    %s107 = ssub.s32 %s17, %s29
    %p108 = scmp.eq.s32.totalorder %s107, 0
    %s110 = sadd.s32 %s109, 1
    %s111 = scalar_select %p108, %s109, %s110
    %p114 = pneg %p108
    %p115 = scmp.eq.s32.totalorder %s10, 1
    %p116 = por %p114, %p115
    %p117 = scmp.ne.s32.totalorder %s109, %s112
    %p118 = scmp.eq.s32.totalorder %s10, 0
    %p119 = por %p117, %p118
    %p120 = scmp.ne.s32.totalorder %s109, %s112
    %p121 = scmp.eq.s32.totalorder %s15, 1
    %p122 = por %p120, %p121
    %p123 = scmp.ne.s32.totalorder %s112, %s113
    %p124 = scmp.eq.s32.totalorder %s15, 0
    %p125 = por %p123, %p124
    %p126 = scmp.ne.s32.totalorder %s112, %s113
    %p127 = scmp.eq.s32.totalorder %s16, 1
    %p128 = por %p126, %p127
    %p130 = scmp.ne.s32.totalorder %s113, %s129
    %p131 = scmp.eq.s32.totalorder %s16, 0
    %p132 = por %p130, %p131
    %p133 = scmp.le.s32.totalorder 1, %s10
    %p134 = scmp.lt.s32.totalorder %s10, 3
    %p135 = pnand %p133, %p134
    %p136 = pneg %p135
    // Predicated region
    $region9: #{tpu_custom_call.1} parent=5 // pred_check
      _
    $region10: #{tpu_custom_call.1} parent=5 // pred_check_branch
      %138 = sbr.rel (%p135) target = $region12
    $region11: #{tpu_custom_call.1} parent=5 // pred_region
      %s139 = ssub.s32 %s10, 1
      // Predicated region
      $region13: #{tpu_custom_call.1} parent=11 // pred_check
        %p140 = pneg %p71
      $region14: #{tpu_custom_call.1} parent=11 // pred_check_branch
        %142 = sbr.rel (%p140) target = $region16
      $region15: #{tpu_custom_call.1} parent=11 // pred_region
        _
      $region16: #{tpu_custom_call.1} parent=11 // pred_fallthru
        _
    $region12: #{tpu_custom_call.1} parent=5 // pred_fallthru
      _
    %p143 = scmp.lt.s32.totalorder %s10, 2
    // Predicated region
    $region17: #{tpu_custom_call.1} parent=5 // pred_check
      %p144 = pneg %p143
    $region18: #{tpu_custom_call.1} parent=5 // pred_check_branch
      %146 = sbr.rel (%p144) target = $region20
    $region19: #{tpu_custom_call.1} parent=5 // pred_region
      // Predicated region
      $region21: #{tpu_custom_call.1} parent=19 // pred_check
        %p147 = pneg %p44
      $region22: #{tpu_custom_call.1} parent=19 // pred_check_branch
        %149 = sbr.rel (%p147) target = $region24
      $region23: #{tpu_custom_call.1} parent=19 // pred_region
        %p150 = scmp.lt.s32.totalorder %s17, 1
        %s151 = scalar_select %p150, %s17, 1
        %p152 = scmp.lt.s32.totalorder %s18, 0
        %s153 = scalar_select %p152, %s18, 0
        %s154 = smul.addr %s151, 16
        %s155 = sadd.s32 %s153, %s154
        %s156 = smul.addr %s155, 8
        %s157 = scalar_lea.vmem %s0, %s156
      $region24: #{tpu_custom_call.1} parent=19 // pred_fallthru
        _
    $region20: #{tpu_custom_call.1} parent=5 // pred_fallthru
      _
    %p158 = scmp.le.s32.totalorder 1, %s10
    %p159 = scmp.lt.s32.totalorder %s10, 3
    %p160 = pnand %p158, %p159
    %p161 = pneg %p160
    // Predicated region
    $region25: #{tpu_custom_call.1} parent=5 // pred_check
      _
    $region26: #{tpu_custom_call.1} parent=5 // pred_check_branch
      %163 = sbr.rel (%p160) target = $region28
    $region27: #{tpu_custom_call.1} parent=5 // pred_region
      %s164 = ssub.s32 %s10, 1
      %p165 = scmp.lt.s32.totalorder %s19, 1
      %s166 = scalar_select %p165, %s19, 1
      %p167 = scmp.lt.s32.totalorder %s20, 0
      %s168 = scalar_select %p167, %s20, 0
      %s169 = smul.addr %s166, 16
      %s170 = sadd.s32 %s168, %s169
      %s171 = smul.addr %s170, 8
      %s172 = scalar_lea.vmem %s0, %s171
      %p173 = pneg %p50
      %p174 = pneg %p47
      %p175 = pneg %p71
      %p176 = pneg %p68
      %p177 = pneg %p99
      %p178 = pneg %p96
      %p179 = scmp.lt.s32.totalorder %s19, 1
      %s180 = scalar_select %p179, %s19, 1
      %p181 = scmp.lt.s32.totalorder %s20, 0
      %s182 = scalar_select %p181, %s20, 0
      %s183 = smul.addr %s180, 16
      %s184 = sadd.s32 %s182, %s183
      %s185 = smul.addr %s184, 8
      %s186 = scalar_lea.vmem %s2, %s185
      %p187 = pneg %p125
      %p188 = pneg %p122
      %p189 = scmp.lt.s32.totalorder %s19, 1
      %s190 = scalar_select %p189, %s19, 1
      %s191 = smul.addr %s190, 16
      %s192 = smul.addr %s191, 8
      %s193 = scalar_lea.vmem %s3, %s192
      %p194 = scmp.lt.s32.totalorder %s19, 1
      %s195 = scalar_select %p194, %s19, 1
      %p196 = scmp.lt.s32.totalorder %s20, 0
      %s197 = scalar_select %p196, %s20, 0
      %s198 = smul.addr %s195, 16
      %s199 = sadd.s32 %s197, %s198
      %s200 = smul.addr %s199, 8
      %s201 = scalar_lea.vmem %s0, %s200
      %p202 = scmp.lt.s32.totalorder %s19, 1
      %s203 = scalar_select %p202, %s19, 1
      %p204 = scmp.lt.s32.totalorder %s20, 0
      %s205 = scalar_select %p204, %s20, 0
      %s206 = smul.addr %s203, 16
      %s207 = sadd.s32 %s205, %s206
      %s208 = smul.addr %s207, 8
      %s209 = scalar_lea.vmem %s2, %s208
      %p210 = scmp.lt.s32.totalorder %s19, 1
      %s211 = scalar_select %p210, %s19, 1
      %s212 = smul.addr %s211, 16
      %s213 = smul.addr %s212, 8
      %s214 = scalar_lea.vmem %s3, %s213
      %v215 = vld [vmem:[%s201] sm:$0xff]
      %v216 = vld [vmem:[%s201 + $0x8] sm:$0xff]
      %v217 = vld [vmem:[%s201 + $0x10] sm:$0xff]
      %v218 = vld [vmem:[%s201 + $0x18] sm:$0xff]
      %v219 = vld [vmem:[%s201 + $0x20] sm:$0xff]
      %v220 = vld [vmem:[%s201 + $0x28] sm:$0xff]
      %v221 = vld [vmem:[%s201 + $0x30] sm:$0xff]
      %v222 = vld [vmem:[%s201 + $0x38] sm:$0xff]
      %v223 = vld [vmem:[%s201 + $0x40] sm:$0xff]
      %v224 = vld [vmem:[%s201 + $0x48] sm:$0xff]
      %v225 = vld [vmem:[%s201 + $0x50] sm:$0xff]
      %v226 = vld [vmem:[%s201 + $0x58] sm:$0xff]
      %v227 = vld [vmem:[%s201 + $0x60] sm:$0xff]
      %v228 = vld [vmem:[%s201 + $0x68] sm:$0xff]
      %v229 = vld [vmem:[%s201 + $0x70] sm:$0xff]
      %v230 = vld [vmem:[%s201 + $0x78] sm:$0xff]
      %v231 = vld [vmem:[%s1] sm:$0xff]
      %v232 = vld [vmem:[%s1 + $0x8] sm:$0xff]
      %v233 = vld [vmem:[%s1 + $0x10] sm:$0xff]
      %v234 = vld [vmem:[%s1 + $0x18] sm:$0xff]
      %v235 = vld [vmem:[%s1 + $0x20] sm:$0xff]
      %v236 = vld [vmem:[%s1 + $0x28] sm:$0xff]
      %v237 = vld [vmem:[%s1 + $0x30] sm:$0xff]
      %v238 = vld [vmem:[%s1 + $0x38] sm:$0xff]
      %v239 = vld [vmem:[%s1 + $0x40] sm:$0xff]
      %v240 = vld [vmem:[%s1 + $0x48] sm:$0xff]
      %v241 = vld [vmem:[%s1 + $0x50] sm:$0xff]
      %v242 = vld [vmem:[%s1 + $0x58] sm:$0xff]
      %v243 = vld [vmem:[%s1 + $0x60] sm:$0xff]
      %v244 = vld [vmem:[%s1 + $0x68] sm:$0xff]
      %v245 = vld [vmem:[%s1 + $0x70] sm:$0xff]
      %v246 = vld [vmem:[%s1 + $0x78] sm:$0xff]
      %247 = vmatpush.msra.mxu0 %v230
      %248 = vmatpush.msra.mxu0 %v229
      %249 = vmatpush.msra.mxu0 %v228
      %250 = vmatpush.msra.mxu0 %v227
      %251 = vmatpush.msra.mxu0 %v226
      %252 = vmatpush.msra.mxu0 %v225
      %253 = vmatpush.msra.mxu0 %v224
      %254 = vmatpush.msra.mxu0 %v223
      %255 = vmatpush.msra.mxu0 %v222
      %256 = vmatpush.msra.mxu0 %v221
      %257 = vmatpush.msra.mxu0 %v220
      %258 = vmatpush.msra.mxu0 %v219
      %259 = vmatpush.msra.mxu0 %v218
      %260 = vmatpush.msra.mxu0 %v217
      %261 = vmatpush.msra.mxu0 %v216
      %262 = vmatpush.msra.mxu0 %v215
      %263 = vmatmul.f32.gmra.mxu0 %v231
      %v264 = vpop.f32.mrf.mxu0
      %v265 = vadd.f32 0.0, %v264
      %266 = vmatmul.f32.gmra.mxu0 %v232
      %v267 = vpop.f32.mrf.mxu0
      %v268 = vadd.f32 0.0, %v267
      %269 = vmatmul.f32.gmra.mxu0 %v233
      %v270 = vpop.f32.mrf.mxu0
      %v271 = vadd.f32 0.0, %v270
      %272 = vmatmul.f32.gmra.mxu0 %v234
      %v273 = vpop.f32.mrf.mxu0
      %v274 = vadd.f32 0.0, %v273
      %275 = vmatmul.f32.gmra.mxu0 %v235
      %v276 = vpop.f32.mrf.mxu0
      %v277 = vadd.f32 0.0, %v276
      %278 = vmatmul.f32.gmra.mxu0 %v236
      %v279 = vpop.f32.mrf.mxu0
      %v280 = vadd.f32 0.0, %v279
      %281 = vmatmul.f32.gmra.mxu0 %v237
      %v282 = vpop.f32.mrf.mxu0
      %v283 = vadd.f32 0.0, %v282
      %284 = vmatmul.f32.gmra.mxu0 %v238
      %v285 = vpop.f32.mrf.mxu0
      %v286 = vadd.f32 0.0, %v285
      %287 = vmatmul.f32.gmra.mxu0 %v239
      %v288 = vpop.f32.mrf.mxu0
      %v289 = vadd.f32 0.0, %v288
      %290 = vmatmul.f32.gmra.mxu0 %v240
      %v291 = vpop.f32.mrf.mxu0
      %v292 = vadd.f32 0.0, %v291
      %293 = vmatmul.f32.gmra.mxu0 %v241
      %v294 = vpop.f32.mrf.mxu0
      %v295 = vadd.f32 0.0, %v294
      %296 = vmatmul.f32.gmra.mxu0 %v242
      %v297 = vpop.f32.mrf.mxu0
      %v298 = vadd.f32 0.0, %v297
      %299 = vmatmul.f32.gmra.mxu0 %v243
      %v300 = vpop.f32.mrf.mxu0
      %v301 = vadd.f32 0.0, %v300
      %302 = vmatmul.f32.gmra.mxu0 %v244
      %v303 = vpop.f32.mrf.mxu0
      %v304 = vadd.f32 0.0, %v303
      %305 = vmatmul.f32.gmra.mxu0 %v245
      %v306 = vpop.f32.mrf.mxu0
      %v307 = vadd.f32 0.0, %v306
      %308 = vmatmul.f32.gmra.mxu0 %v246
      %v309 = vpop.f32.mrf.mxu0
      %v310 = vadd.f32 0.0, %v309
      %311 = vdwg.mxu0
      %vm312 = vcmask 130048
      %313 = vst.msk [vmem:[%s209] sm:$0xff] %vm312, %v265
      %314 = vst.msk [vmem:[%s209 + $0x8] sm:$0xff] %vm312, %v268
      %315 = vst.msk [vmem:[%s209 + $0x10] sm:$0xff] %vm312, %v271
      %316 = vst.msk [vmem:[%s209 + $0x18] sm:$0xff] %vm312, %v274
      %317 = vst.msk [vmem:[%s209 + $0x20] sm:$0xff] %vm312, %v277
      %318 = vst.msk [vmem:[%s209 + $0x28] sm:$0xff] %vm312, %v280
      %319 = vst.msk [vmem:[%s209 + $0x30] sm:$0xff] %vm312, %v283
      %320 = vst.msk [vmem:[%s209 + $0x38] sm:$0xff] %vm312, %v286
      %321 = vst.msk [vmem:[%s209 + $0x40] sm:$0xff] %vm312, %v289
      %322 = vst.msk [vmem:[%s209 + $0x48] sm:$0xff] %vm312, %v292
      %323 = vst.msk [vmem:[%s209 + $0x50] sm:$0xff] %vm312, %v295
      %324 = vst.msk [vmem:[%s209 + $0x58] sm:$0xff] %vm312, %v298
      %325 = vst.msk [vmem:[%s209 + $0x60] sm:$0xff] %vm312, %v301
      %326 = vst.msk [vmem:[%s209 + $0x68] sm:$0xff] %vm312, %v304
      %327 = vst.msk [vmem:[%s209 + $0x70] sm:$0xff] %vm312, %v307
      %328 = vst.msk [vmem:[%s209 + $0x78] sm:$0xff] %vm312, %v310
      %p329 = scmp.eq.s32.totalorder %s20, 0
      // Predicated region
      $region29: #{tpu_custom_call.1} parent=27 // pred_check
        %p330 = pneg %p329
      $region30: #{tpu_custom_call.1} parent=27 // pred_check_branch
        %332 = sbr.rel (%p330) target = $region32
      $region31: #{tpu_custom_call.1} parent=27 // pred_region
        %vm333 = vcmask 64512
        %334 = vst.msk [vmem:[%s214] sm:$0xff] %vm333, 0.0
        %335 = vst.msk [vmem:[%s214 + $0x8] sm:$0xff] %vm333, 0.0
        %336 = vst.msk [vmem:[%s214 + $0x10] sm:$0xff] %vm333, 0.0
        %337 = vst.msk [vmem:[%s214 + $0x18] sm:$0xff] %vm333, 0.0
        %338 = vst.msk [vmem:[%s214 + $0x20] sm:$0xff] %vm333, 0.0
        %339 = vst.msk [vmem:[%s214 + $0x28] sm:$0xff] %vm333, 0.0
        %340 = vst.msk [vmem:[%s214 + $0x30] sm:$0xff] %vm333, 0.0
        %341 = vst.msk [vmem:[%s214 + $0x38] sm:$0xff] %vm333, 0.0
        %342 = vst.msk [vmem:[%s214 + $0x40] sm:$0xff] %vm333, 0.0
        %343 = vst.msk [vmem:[%s214 + $0x48] sm:$0xff] %vm333, 0.0
        %344 = vst.msk [vmem:[%s214 + $0x50] sm:$0xff] %vm333, 0.0
        %345 = vst.msk [vmem:[%s214 + $0x58] sm:$0xff] %vm333, 0.0
        %346 = vst.msk [vmem:[%s214 + $0x60] sm:$0xff] %vm333, 0.0
        %347 = vst.msk [vmem:[%s214 + $0x68] sm:$0xff] %vm333, 0.0
        %348 = vst.msk [vmem:[%s214 + $0x70] sm:$0xff] %vm333, 0.0
        %349 = vst.msk [vmem:[%s214 + $0x78] sm:$0xff] %vm333, 0.0
      $region32: #{tpu_custom_call.1} parent=27 // pred_fallthru
        _
      %v350 = vsel %vm312, %v265, 0.0
      %351 = vadd.xlane.f32.xlu0 %v350
      %v352 = vpop.xlane.xlu0 %351
      %v353 = vsel %vm312, %v268, 0.0
      %354 = vadd.xlane.f32.xlu0 %v353
      %v355 = vpop.xlane.xlu0 %354
      %v356 = vsel %vm312, %v271, 0.0
      %357 = vadd.xlane.f32.xlu0 %v356
      %v358 = vpop.xlane.xlu0 %357
      %v359 = vsel %vm312, %v274, 0.0
      %360 = vadd.xlane.f32.xlu0 %v359
      %v361 = vpop.xlane.xlu0 %360
      %v362 = vsel %vm312, %v277, 0.0
      %363 = vadd.xlane.f32.xlu0 %v362
      %v364 = vpop.xlane.xlu0 %363
      %v365 = vsel %vm312, %v280, 0.0
      %366 = vadd.xlane.f32.xlu0 %v365
      %v367 = vpop.xlane.xlu0 %366
      %v368 = vsel %vm312, %v283, 0.0
      %369 = vadd.xlane.f32.xlu0 %v368
      %v370 = vpop.xlane.xlu0 %369
      %v371 = vsel %vm312, %v286, 0.0
      %372 = vadd.xlane.f32.xlu0 %v371
      %v373 = vpop.xlane.xlu0 %372
      %v374 = vsel %vm312, %v289, 0.0
      %375 = vadd.xlane.f32.xlu0 %v374
      %v376 = vpop.xlane.xlu0 %375
      %v377 = vsel %vm312, %v292, 0.0
      %378 = vadd.xlane.f32.xlu0 %v377
      %v379 = vpop.xlane.xlu0 %378
      %v380 = vsel %vm312, %v295, 0.0
      %381 = vadd.xlane.f32.xlu0 %v380
      %v382 = vpop.xlane.xlu0 %381
      %v383 = vsel %vm312, %v298, 0.0
      %384 = vadd.xlane.f32.xlu0 %v383
      %v385 = vpop.xlane.xlu0 %384
      %v386 = vsel %vm312, %v301, 0.0
      %387 = vadd.xlane.f32.xlu0 %v386
      %v388 = vpop.xlane.xlu0 %387
      %v389 = vsel %vm312, %v304, 0.0
      %390 = vadd.xlane.f32.xlu0 %v389
      %v391 = vpop.xlane.xlu0 %390
      %v392 = vsel %vm312, %v307, 0.0
      %393 = vadd.xlane.f32.xlu0 %v392
      %v394 = vpop.xlane.xlu0 %393
      %v395 = vsel %vm312, %v310, 0.0
      %396 = vadd.xlane.f32.xlu0 %v395
      %v397 = vpop.xlane.xlu0 %396
      %v398 = vmul.f32 %v265, %v265
      %v399 = vmul.f32 %v268, %v268
      %v400 = vmul.f32 %v271, %v271
      %v401 = vmul.f32 %v274, %v274
      %v402 = vmul.f32 %v277, %v277
      %v403 = vmul.f32 %v280, %v280
      %v404 = vmul.f32 %v283, %v283
      %v405 = vmul.f32 %v286, %v286
      %v406 = vmul.f32 %v289, %v289
      %v407 = vmul.f32 %v292, %v292
      %v408 = vmul.f32 %v295, %v295
      %v409 = vmul.f32 %v298, %v298
      %v410 = vmul.f32 %v301, %v301
      %v411 = vmul.f32 %v304, %v304
      %v412 = vmul.f32 %v307, %v307
      %v413 = vmul.f32 %v310, %v310
      %v414 = vsel %vm312, %v398, 0.0
      %415 = vadd.xlane.f32.xlu0 %v414
      %v416 = vpop.xlane.xlu0 %415
      %v417 = vsel %vm312, %v399, 0.0
      %418 = vadd.xlane.f32.xlu0 %v417
      %v419 = vpop.xlane.xlu0 %418
      %v420 = vsel %vm312, %v400, 0.0
      %421 = vadd.xlane.f32.xlu0 %v420
      %v422 = vpop.xlane.xlu0 %421
      %v423 = vsel %vm312, %v401, 0.0
      %424 = vadd.xlane.f32.xlu0 %v423
      %v425 = vpop.xlane.xlu0 %424
      %v426 = vsel %vm312, %v402, 0.0
      %427 = vadd.xlane.f32.xlu0 %v426
      %v428 = vpop.xlane.xlu0 %427
      %v429 = vsel %vm312, %v403, 0.0
      %430 = vadd.xlane.f32.xlu0 %v429
      %v431 = vpop.xlane.xlu0 %430
      %v432 = vsel %vm312, %v404, 0.0
      %433 = vadd.xlane.f32.xlu0 %v432
      %v434 = vpop.xlane.xlu0 %433
      %v435 = vsel %vm312, %v405, 0.0
      %436 = vadd.xlane.f32.xlu0 %v435
      %v437 = vpop.xlane.xlu0 %436
      %v438 = vsel %vm312, %v406, 0.0
      %439 = vadd.xlane.f32.xlu0 %v438
      %v440 = vpop.xlane.xlu0 %439
      %v441 = vsel %vm312, %v407, 0.0
      %442 = vadd.xlane.f32.xlu0 %v441
      %v443 = vpop.xlane.xlu0 %442
      %v444 = vsel %vm312, %v408, 0.0
      %445 = vadd.xlane.f32.xlu0 %v444
      %v446 = vpop.xlane.xlu0 %445
      %v447 = vsel %vm312, %v409, 0.0
      %448 = vadd.xlane.f32.xlu0 %v447
      %v449 = vpop.xlane.xlu0 %448
      %v450 = vsel %vm312, %v410, 0.0
      %451 = vadd.xlane.f32.xlu0 %v450
      %v452 = vpop.xlane.xlu0 %451
      %v453 = vsel %vm312, %v411, 0.0
      %454 = vadd.xlane.f32.xlu0 %v453
      %v455 = vpop.xlane.xlu0 %454
      %v456 = vsel %vm312, %v412, 0.0
      %457 = vadd.xlane.f32.xlu0 %v456
      %v458 = vpop.xlane.xlu0 %457
      %v459 = vsel %vm312, %v413, 0.0
      %460 = vadd.xlane.f32.xlu0 %v459
      %v461 = vpop.xlane.xlu0 %460
      %v462 = vlaneseq
      %v463 = vand.u32 %v462, 127
      %vm464 = vcmp.eq.s32.totalorder %v463, 0
      %v465 = vsel %vm464, %v352, 0.0
      %v466 = vsel %vm464, %v355, 0.0
      %v467 = vsel %vm464, %v358, 0.0
      %v468 = vsel %vm464, %v361, 0.0
      %v469 = vsel %vm464, %v364, 0.0
      %v470 = vsel %vm464, %v367, 0.0
      %v471 = vsel %vm464, %v370, 0.0
      %v472 = vsel %vm464, %v373, 0.0
      %v473 = vsel %vm464, %v376, 0.0
      %v474 = vsel %vm464, %v379, 0.0
      %v475 = vsel %vm464, %v382, 0.0
      %v476 = vsel %vm464, %v385, 0.0
      %v477 = vsel %vm464, %v388, 0.0
      %v478 = vsel %vm464, %v391, 0.0
      %v479 = vsel %vm464, %v394, 0.0
      %v480 = vsel %vm464, %v397, 0.0
      %vm481 = vcmp.eq.s32.totalorder %v463, 1
      %v482 = vsel %vm481, %v416, 0.0
      %v483 = vsel %vm481, %v419, 0.0
      %v484 = vsel %vm481, %v422, 0.0
      %v485 = vsel %vm481, %v425, 0.0
      %v486 = vsel %vm481, %v428, 0.0
      %v487 = vsel %vm481, %v431, 0.0
      %v488 = vsel %vm481, %v434, 0.0
      %v489 = vsel %vm481, %v437, 0.0
      %v490 = vsel %vm481, %v440, 0.0
      %v491 = vsel %vm481, %v443, 0.0
      %v492 = vsel %vm481, %v446, 0.0
      %v493 = vsel %vm481, %v449, 0.0
      %v494 = vsel %vm481, %v452, 0.0
      %v495 = vsel %vm481, %v455, 0.0
      %v496 = vsel %vm481, %v458, 0.0
      %v497 = vsel %vm481, %v461, 0.0
      %v498 = vadd.f32 %v465, %v482
      %v499 = vadd.f32 %v466, %v483
      %v500 = vadd.f32 %v467, %v484
      %v501 = vadd.f32 %v468, %v485
      %v502 = vadd.f32 %v469, %v486
      %v503 = vadd.f32 %v470, %v487
      %v504 = vadd.f32 %v471, %v488
      %v505 = vadd.f32 %v472, %v489
      %v506 = vadd.f32 %v473, %v490
      %v507 = vadd.f32 %v474, %v491
      %v508 = vadd.f32 %v475, %v492
      %v509 = vadd.f32 %v476, %v493
      %v510 = vadd.f32 %v477, %v494
      %v511 = vadd.f32 %v478, %v495
      %v512 = vadd.f32 %v479, %v496
      %v513 = vadd.f32 %v480, %v497
      %v514 = vld [vmem:[%s214] sm:$0xff]
      %v515 = vld [vmem:[%s214 + $0x8] sm:$0xff]
      %v516 = vld [vmem:[%s214 + $0x10] sm:$0xff]
      %v517 = vld [vmem:[%s214 + $0x18] sm:$0xff]
      %v518 = vld [vmem:[%s214 + $0x20] sm:$0xff]
      %v519 = vld [vmem:[%s214 + $0x28] sm:$0xff]
      %v520 = vld [vmem:[%s214 + $0x30] sm:$0xff]
      %v521 = vld [vmem:[%s214 + $0x38] sm:$0xff]
      %v522 = vld [vmem:[%s214 + $0x40] sm:$0xff]
      %v523 = vld [vmem:[%s214 + $0x48] sm:$0xff]
      %v524 = vld [vmem:[%s214 + $0x50] sm:$0xff]
      %v525 = vld [vmem:[%s214 + $0x58] sm:$0xff]
      %v526 = vld [vmem:[%s214 + $0x60] sm:$0xff]
      %v527 = vld [vmem:[%s214 + $0x68] sm:$0xff]
      %v528 = vld [vmem:[%s214 + $0x70] sm:$0xff]
      %v529 = vld [vmem:[%s214 + $0x78] sm:$0xff]
      %v530 = vadd.f32 %v514, %v498
      %v531 = vadd.f32 %v515, %v499
      %v532 = vadd.f32 %v516, %v500
      %v533 = vadd.f32 %v517, %v501
      %v534 = vadd.f32 %v518, %v502
      %v535 = vadd.f32 %v519, %v503
      %v536 = vadd.f32 %v520, %v504
      %v537 = vadd.f32 %v521, %v505
      %v538 = vadd.f32 %v522, %v506
      %v539 = vadd.f32 %v523, %v507
      %v540 = vadd.f32 %v524, %v508
      %v541 = vadd.f32 %v525, %v509
      %v542 = vadd.f32 %v526, %v510
      %v543 = vadd.f32 %v527, %v511
      %v544 = vadd.f32 %v528, %v512
      %v545 = vadd.f32 %v529, %v513
      %vm546 = vcmask 64512
      %547 = vst.msk [vmem:[%s214] sm:$0xff] %vm546, %v530
      %548 = vst.msk [vmem:[%s214 + $0x8] sm:$0xff] %vm546, %v531
      %549 = vst.msk [vmem:[%s214 + $0x10] sm:$0xff] %vm546, %v532
      %550 = vst.msk [vmem:[%s214 + $0x18] sm:$0xff] %vm546, %v533
      %551 = vst.msk [vmem:[%s214 + $0x20] sm:$0xff] %vm546, %v534
      %552 = vst.msk [vmem:[%s214 + $0x28] sm:$0xff] %vm546, %v535
      %553 = vst.msk [vmem:[%s214 + $0x30] sm:$0xff] %vm546, %v536
      %554 = vst.msk [vmem:[%s214 + $0x38] sm:$0xff] %vm546, %v537
      %555 = vst.msk [vmem:[%s214 + $0x40] sm:$0xff] %vm546, %v538
      %556 = vst.msk [vmem:[%s214 + $0x48] sm:$0xff] %vm546, %v539
      %557 = vst.msk [vmem:[%s214 + $0x50] sm:$0xff] %vm546, %v540
      %558 = vst.msk [vmem:[%s214 + $0x58] sm:$0xff] %vm546, %v541
      %559 = vst.msk [vmem:[%s214 + $0x60] sm:$0xff] %vm546, %v542
      %560 = vst.msk [vmem:[%s214 + $0x68] sm:$0xff] %vm546, %v543
      %561 = vst.msk [vmem:[%s214 + $0x70] sm:$0xff] %vm546, %v544
      %562 = vst.msk [vmem:[%s214 + $0x78] sm:$0xff] %vm546, %v545
      %p563 = scmp.lt.s32.totalorder %s19, 1
      %s564 = scalar_select %p563, %s19, 1
      %p565 = scmp.lt.s32.totalorder %s20, 0
      %s566 = scalar_select %p565, %s20, 0
      %s567 = smul.addr %s564, 16
      %s568 = sadd.s32 %s566, %s567
      %s569 = smul.addr %s568, 8
      %s570 = scalar_lea.vmem %s2, %s569
      %p571 = scmp.lt.s32.totalorder %s19, 1
      %s572 = scalar_select %p571, %s19, 1
      %s573 = smul.addr %s572, 16
      %s574 = smul.addr %s573, 8
      %s575 = scalar_lea.vmem %s3, %s574
      // Predicated region
      $region33: #{tpu_custom_call.1} parent=27 // pred_check
        %p576 = pneg %p96
      $region34: #{tpu_custom_call.1} parent=27 // pred_check_branch
        %578 = sbr.rel (%p576) target = $region36
      $region35: #{tpu_custom_call.1} parent=27 // pred_region
        _
      $region36: #{tpu_custom_call.1} parent=27 // pred_fallthru
        _
      // Predicated region
      $region37: #{tpu_custom_call.1} parent=27 // pred_check
        %p579 = pneg %p122
      $region38: #{tpu_custom_call.1} parent=27 // pred_check_branch
        %581 = sbr.rel (%p579) target = $region40
      $region39: #{tpu_custom_call.1} parent=27 // pred_region
        _
      $region40: #{tpu_custom_call.1} parent=27 // pred_fallthru
        _
    $region28: #{tpu_custom_call.1} parent=5 // pred_fallthru
      _
    %p582 = scmp.le.s32.totalorder 2, %s10
    // Predicated region
    $region41: #{tpu_custom_call.1} parent=5 // pred_check
      %p583 = pneg %p582
    $region42: #{tpu_custom_call.1} parent=5 // pred_check_branch
      %585 = sbr.rel (%p583) target = $region44
    $region43: #{tpu_custom_call.1} parent=5 // pred_region
      %s586 = ssub.s32 %s10, 2
      // Predicated region
      $region45: #{tpu_custom_call.1} parent=43 // pred_check
        %p587 = pneg %p102
      $region46: #{tpu_custom_call.1} parent=43 // pred_check_branch
        %589 = sbr.rel (%p587) target = $region48
      $region47: #{tpu_custom_call.1} parent=43 // pred_region
        %p590 = scmp.lt.s32.totalorder %s21, 1
        %s591 = scalar_select %p590, %s21, 1
        %p592 = scmp.lt.s32.totalorder %s22, 0
        %s593 = scalar_select %p592, %s22, 0
        %s594 = smul.addr %s591, 16
        %s595 = sadd.s32 %s593, %s594
        %s596 = smul.addr %s595, 8
        %s597 = scalar_lea.vmem %s2, %s596
      $region48: #{tpu_custom_call.1} parent=43 // pred_fallthru
        _
      // Predicated region
      $region49: #{tpu_custom_call.1} parent=43 // pred_check
        %p598 = pneg %p128
      $region50: #{tpu_custom_call.1} parent=43 // pred_check_branch
        %600 = sbr.rel (%p598) target = $region52
      $region51: #{tpu_custom_call.1} parent=43 // pred_region
        %p601 = scmp.lt.s32.totalorder %s21, 1
        %s602 = scalar_select %p601, %s21, 1
        %s603 = smul.addr %s602, 16
        %s604 = smul.addr %s603, 8
        %s605 = scalar_lea.vmem %s3, %s604
      $region52: #{tpu_custom_call.1} parent=43 // pred_fallthru
        _
    $region44: #{tpu_custom_call.1} parent=5 // pred_fallthru
      _
  $region6: #{tpu_custom_call.1} parent=0 // loop_footer
    %s14 = sadd.s32 1, %s10
  $region7: #{tpu_custom_call.1} parent=0 // loop_footer_branch
    %9 = sbr.rel target = $region3
  $region8: #{tpu_custom_call.1} parent=0 // loop_exit
    _

</llo_original>
